<compile_context>
chip_gen: v7x
topology: tpu7x:2x2x1
jax: 0.10.0
libtpu: 0.0.40
codegen_flags: <defaults>
</compile_context>

<pallas_src>
import functools

import numpy as np
import jax
import jax.numpy as jnp
from jax.experimental import pallas as pl
from jax.experimental.pallas import tpu as pltpu

HIDDEN = 512
_SQRT_2_OVER_PI = float(np.sqrt(2.0 / np.pi))


def _gelu_tanh(x):
    # TODO(synk): torch nn.GELU() defaults to the exact erf form; we use the
    # tanh approximation (EUP tanh, no erf lowering needed), |diff| < ~1e-3.
    c = jnp.float32(_SQRT_2_OVER_PI)
    return 0.5 * x * (1.0 + jnp.tanh(c * (x + jnp.float32(0.044715) * x * x * x)))


def _mlp_kernel(x_ref, w1_ref, b1_ref, w2_ref, b2_ref, o_ref):
    # Eval-mode forward: Linear -> GELU -> (dropout == identity) -> Linear.
    # Cast activations to the bf16 weight dtype so both dots are native MXU
    # bf16 matmuls with f32 accumulation.
    x = x_ref[...].astype(w1_ref.dtype)
    h = jnp.dot(x, w1_ref[...], preferred_element_type=jnp.float32)
    h = _gelu_tanh(h + b1_ref[...])
    # Note: second matmul has N = n_in = 128 (half-fills the 256-wide MXU on
    # v6e/v7x) -- accepted as a model-shape limit for a single MLP instance.
    out = jnp.dot(h.astype(w2_ref.dtype), w2_ref[...],
                  preferred_element_type=jnp.float32) + b2_ref[...]
    o_ref[...] = out.astype(o_ref.dtype)


def _mlp_dropout_kernel(x_ref, w1_ref, b1_ref, w2_ref, b2_ref, u_ref, o_ref,
                        *, p_drop):
    # Training-mode forward with inverted dropout on the hidden activation.
    # The 1/(1-p) rescale is pre-folded into w2 (one-time wrapper op), so the
    # kernel only needs a compare + select per hidden element.
    x = x_ref[...].astype(w1_ref.dtype)
    h = jnp.dot(x, w1_ref[...], preferred_element_type=jnp.float32)
    h = _gelu_tanh(h + b1_ref[...])
    keep = u_ref[...] >= jnp.float32(p_drop)          # P(keep) = 1 - p
    h = jnp.where(keep, h, jnp.float32(0.0))
    out = jnp.dot(h.astype(w2_ref.dtype), w2_ref[...],
                  preferred_element_type=jnp.float32) + b2_ref[...]
    o_ref[...] = out.astype(o_ref.dtype)


def _round_up(a, b):
    return ((a + b - 1) // b) * b


def mlp_forward(x, w1, b1, w2, b2, *, p_drop=0.2, training=False, rng=None,
                tm=512, compute_dtype=jnp.bfloat16):
    """Pallas equivalent of MLP.forward: Linear(n_in->512) -> GELU -> Dropout -> Linear(512->n_in)."""
    orig_shape = x.shape
    n_in = orig_shape[-1]
    hidden = w1.shape[1]
    x2 = x.reshape(-1, n_in)
    M = x2.shape[0]

    # Row tile: multiple of 8 sublanes (x/out blocks stay f32 in HBM), capped
    # at the row count. If that leaves only one grid step but there is enough
    # work, split it in two so v7x's two TensorCores both get a tile.
    sub = 8
    tm = _round_up(min(tm, _round_up(M, sub)), sub)
    if pl.cdiv(M, tm) == 1 and M > sub:
        tm = _round_up(-(-M // 2), sub)
    grid = (pl.cdiv(M, tm),)  # ragged last block handled by Pallas masking

    # Weights converted to bf16 once (tiny, VMEM-resident across grid steps);
    # biases stay f32 and add onto the f32 accumulator.
    w1c = w1.astype(compute_dtype)
    b1_2d = b1.reshape(1, hidden).astype(jnp.float32)
    b2_2d = b2.reshape(1, n_in).astype(jnp.float32)

    x_spec = pl.BlockSpec((tm, n_in), lambda i: (i, 0))
    w1_spec = pl.BlockSpec((n_in, hidden), lambda i: (0, 0))
    b1_spec = pl.BlockSpec((1, hidden), lambda i: (0, 0))
    w2_spec = pl.BlockSpec((hidden, n_in), lambda i: (0, 0))
    b2_spec = pl.BlockSpec((1, n_in), lambda i: (0, 0))
    o_spec = pl.BlockSpec((tm, n_in), lambda i: (i, 0))

    # Working set at tm=512 is ~3 MiB, far under any chip's scoped-VMEM
    # default (16 MiB on v5e), so no explicit vmem_limit_bytes is needed.
    compiler_params = pltpu.CompilerParams(dimension_semantics=("parallel",))
    out_shape = jax.ShapeDtypeStruct((M, n_in), x.dtype)

    if training and p_drop > 0.0:
        if rng is None:
            # Callers should pass a fresh key per training step so the dropout
            # mask does not repeat across steps.
            rng = jax.random.PRNGKey(0)
        u = jax.random.uniform(rng, (M, hidden), dtype=jnp.float32)
        w2c = (w2.astype(jnp.float32) * (1.0 / (1.0 - p_drop))).astype(compute_dtype)
        u_spec = pl.BlockSpec((tm, hidden), lambda i: (i, 0))
        kernel = functools.partial(_mlp_dropout_kernel, p_drop=float(p_drop))
        out = pl.pallas_call(
            kernel,
            out_shape=out_shape,
            grid=grid,
            in_specs=[x_spec, w1_spec, b1_spec, w2_spec, b2_spec, u_spec],
            out_specs=o_spec,
            compiler_params=compiler_params,
        )(x2, w1c, b1_2d, w2c, b2_2d, u)
    else:
        w2c = w2.astype(compute_dtype)
        out = pl.pallas_call(
            _mlp_kernel,
            out_shape=out_shape,
            grid=grid,
            in_specs=[x_spec, w1_spec, b1_spec, w2_spec, b2_spec],
            out_specs=o_spec,
            compiler_params=compiler_params,
        )(x2, w1c, b1_2d, w2c, b2_2d)

    return out.reshape(orig_shape)


if __name__ == "__main__":
    key = jax.random.PRNGKey(0)
    kx, k1, k2, k3, k4, kd = jax.random.split(key, 6)

    # Small shapes consistent with the module: (batch, seq, n_in) with
    # n_in = 128 (lane-aligned), hidden = 512 as hardcoded in the torch MLP.
    B, T, n_in = 2, 8, 128
    x = jax.random.normal(kx, (B, T, n_in), dtype=jnp.float32)
    w1 = jax.random.normal(k1, (n_in, HIDDEN), dtype=jnp.float32) * 0.05
    b1 = jax.random.normal(k2, (HIDDEN,), dtype=jnp.float32) * 0.05
    w2 = jax.random.normal(k3, (HIDDEN, n_in), dtype=jnp.float32) * 0.05
    b2 = jax.random.normal(k4, (n_in,), dtype=jnp.float32) * 0.05

    # Eval-mode forward (dropout = identity) -- deterministic, check vs reference.
    out = jax.block_until_ready(mlp_forward(x, w1, b1, w2, b2, training=False))

    # Reference in float64 with the same bf16 operand rounding the kernel applies.
    def bf16_f64(a):
        return np.asarray(jnp.asarray(a).astype(jnp.bfloat16).astype(jnp.float32),
                          dtype=np.float64)

    xn = bf16_f64(x).reshape(-1, n_in)
    w1n, w2n = bf16_f64(w1), bf16_f64(w2)
    b1n = np.asarray(b1, dtype=np.float64)
    b2n = np.asarray(b2, dtype=np.float64)
    hn = xn @ w1n + b1n
    gn = 0.5 * hn * (1.0 + np.tanh(np.sqrt(2.0 / np.pi) * (hn + 0.044715 * hn ** 3)))
    gn = bf16_f64(gn.astype(np.float32))
    refn = (gn @ w2n + b2n).astype(np.float32).reshape(B, T, n_in)

    assert out.shape == x.shape and out.dtype == x.dtype
    np.testing.assert_allclose(np.asarray(out), refn, atol=2e-2, rtol=2e-2)

    # Training-mode forward (streamed dropout mask) -- sanity-check it runs.
    out_tr = jax.block_until_ready(
        mlp_forward(x, w1, b1, w2, b2, training=True, rng=kd))
    assert out_tr.shape == x.shape and out_tr.dtype == x.dtype
    assert bool(jnp.all(jnp.isfinite(out_tr)))

    print("KERNEL_OK")
</pallas_src>

<mosaic_0001>
module attributes {stable_mosaic.version = 11 : i64} {
  func.func @_mlp_kernel(%arg0: i32, %arg1: memref<8x128xf32, #tpu.memory_space<vmem>>, %arg2: memref<128x512xbf16, #tpu.memory_space<vmem>>, %arg3: memref<1x512xf32, #tpu.memory_space<vmem>>, %arg4: memref<512x128xbf16, #tpu.memory_space<vmem>>, %arg5: memref<1x128xf32, #tpu.memory_space<vmem>>, %arg6: memref<8x128xf32, #tpu.memory_space<vmem>>) attributes {dimension_semantics = [#tpu.dimension_semantics<parallel>], iteration_bounds = array<i64: 2>, scalar_prefetch = 0 : i64, scratch_operands = 0 : i64, tpu.core_type = #tpu.core_type<tc>, window_params = [{transform_indices = @transform_0, window_bounds = array<i64: 8, 128>}, {pipeline_mode = #tpu.pipeline_mode<synchronous>, transform_indices = @transform_1, window_bounds = array<i64: 128, 512>}, {pipeline_mode = #tpu.pipeline_mode<synchronous>, transform_indices = @transform_2, window_bounds = array<i64: 1, 512>}, {pipeline_mode = #tpu.pipeline_mode<synchronous>, transform_indices = @transform_3, window_bounds = array<i64: 512, 128>}, {pipeline_mode = #tpu.pipeline_mode<synchronous>, transform_indices = @transform_4, window_bounds = array<i64: 1, 128>}, {transform_indices = @transform_5, window_bounds = array<i64: 8, 128>}]} {
    %c0 = arith.constant 0 : index
    %c0_0 = arith.constant 0 : index
    %0 = vector.load %arg1[%c0, %c0_0] : memref<8x128xf32, #tpu.memory_space<vmem>>, vector<8x128xf32>
    %1 = arith.truncf %0 : vector<8x128xf32> to vector<8x128xbf16>
    %c0_1 = arith.constant 0 : index
    %c0_2 = arith.constant 0 : index
    %2 = vector.load %arg2[%c0_1, %c0_2] : memref<128x512xbf16, #tpu.memory_space<vmem>>, vector<128x512xbf16>
    %cst = arith.constant dense<0.000000e+00> : vector<8x512xf32>
    %3 = tpu.matmul %1, %2, %cst {dimension_numbers = #tpu.dot_dimension_numbers<[1], [0], [0], [1], [0, 0, 1, 1], [], []>} : vector<8x128xbf16>, vector<128x512xbf16>, vector<8x512xf32> -> vector<8x512xf32>
    %c0_3 = arith.constant 0 : index
    %c0_4 = arith.constant 0 : index
    %4 = vector.load %arg3[%c0_3, %c0_4] : memref<1x512xf32, #tpu.memory_space<vmem>>, vector<1x512xf32>
    %5 = vector.broadcast %4 : vector<1x512xf32> to vector<8x512xf32>
    %6 = arith.addf %3, %5 : vector<8x512xf32>
    %cst_5 = arith.constant 5.000000e-01 : f32
    %7 = vector.broadcast %cst_5 : f32 to vector<8x512xf32>
    %8 = arith.mulf %7, %6 : vector<8x512xf32>
    %cst_6 = arith.constant 4.471500e-02 : f32
    %9 = vector.broadcast %cst_6 : f32 to vector<8x512xf32>
    %10 = arith.mulf %9, %6 : vector<8x512xf32>
    %11 = arith.mulf %10, %6 : vector<8x512xf32>
    %12 = arith.mulf %11, %6 : vector<8x512xf32>
    %13 = arith.addf %6, %12 : vector<8x512xf32>
    %cst_7 = arith.constant 0.797884583 : f32
    %14 = vector.broadcast %cst_7 : f32 to vector<8x512xf32>
    %15 = arith.mulf %14, %13 : vector<8x512xf32>
    %16 = math.tanh %15 : vector<8x512xf32>
    %cst_8 = arith.constant 1.000000e+00 : f32
    %17 = vector.broadcast %cst_8 : f32 to vector<8x512xf32>
    %18 = arith.addf %17, %16 : vector<8x512xf32>
    %19 = arith.mulf %8, %18 : vector<8x512xf32>
    %20 = arith.truncf %19 : vector<8x512xf32> to vector<8x512xbf16>
    %c0_9 = arith.constant 0 : index
    %c0_10 = arith.constant 0 : index
    %21 = vector.load %arg4[%c0_9, %c0_10] : memref<512x128xbf16, #tpu.memory_space<vmem>>, vector<512x128xbf16>
    %cst_11 = arith.constant dense<0.000000e+00> : vector<8x128xf32>
    %22 = tpu.matmul %20, %21, %cst_11 {dimension_numbers = #tpu.dot_dimension_numbers<[1], [0], [0], [1], [0, 0, 1, 1], [], []>} : vector<8x512xbf16>, vector<512x128xbf16>, vector<8x128xf32> -> vector<8x128xf32>
    %c0_12 = arith.constant 0 : index
    %c0_13 = arith.constant 0 : index
    %23 = vector.load %arg5[%c0_12, %c0_13] : memref<1x128xf32, #tpu.memory_space<vmem>>, vector<1x128xf32>
    %24 = vector.broadcast %23 : vector<1x128xf32> to vector<8x128xf32>
    %25 = arith.addf %22, %24 : vector<8x128xf32>
    %c0_14 = arith.constant 0 : index
    %c0_15 = arith.constant 0 : index
    %26 = vector.load %arg6[%c0_14, %c0_15] : memref<8x128xf32, #tpu.memory_space<vmem>>, vector<8x128xf32>
    tpu.vector_store %arg6[%c0_14, %c0_15], %25 {strides = array<i32>} : memref<8x128xf32, #tpu.memory_space<vmem>>, vector<8x128xf32>,
    return
  }
  func.func @transform_0(%arg0: i32) -> (i32, i32) {
    %c0_i32 = arith.constant 0 : i32
    %c0_i32_0 = arith.constant 0 : i32
    return %arg0, %c0_i32 : i32, i32
  }
  func.func @transform_1(%arg0: i32) -> (i32, i32) {
    %c0_i32 = arith.constant 0 : i32
    %c0_i32_0 = arith.constant 0 : i32
    %c0_i32_1 = arith.constant 0 : i32
    return %c0_i32, %c0_i32_0 : i32, i32
  }
  func.func @transform_2(%arg0: i32) -> (i32, i32) {
    %c0_i32 = arith.constant 0 : i32
    %c0_i32_0 = arith.constant 0 : i32
    %c0_i32_1 = arith.constant 0 : i32
    return %c0_i32, %c0_i32_0 : i32, i32
  }
  func.func @transform_3(%arg0: i32) -> (i32, i32) {
    %c0_i32 = arith.constant 0 : i32
    %c0_i32_0 = arith.constant 0 : i32
    %c0_i32_1 = arith.constant 0 : i32
    return %c0_i32, %c0_i32_0 : i32, i32
  }
  func.func @transform_4(%arg0: i32) -> (i32, i32) {
    %c0_i32 = arith.constant 0 : i32
    %c0_i32_0 = arith.constant 0 : i32
    %c0_i32_1 = arith.constant 0 : i32
    return %c0_i32, %c0_i32_0 : i32, i32
  }
  func.func @transform_5(%arg0: i32) -> (i32, i32) {
    %c0_i32 = arith.constant 0 : i32
    %c0_i32_0 = arith.constant 0 : i32
    return %arg0, %c0_i32 : i32, i32
  }
}

</mosaic_0001>

<llo_original>
// kernel: tpu_custom_call.1
$region0: #{tpu_custom_call.1}
  #allocation0 [shape = 'u32[]', space=smem, size = 0x4, offset = 0x4, fixed_abs, tag = 'smem constant byte address 0x4 - core index']
  #allocation1 [shape = 'u32[144,128]{1,0:T(1,128)}', space=vmem, size = 0x12000, scoped, tag = 'internal scratch']
  %s0 = inlined_call_operand.hbm [shape: f32[16,128], index: 0, kind: input, shape index: {}]
  %s1 = inlined_call_operand.hbm [shape: bf16[128,512], index: 1, kind: input, shape index: {}]
  %s2 = inlined_call_operand.vmem [shape: f32[1,512], index: 2, kind: input, shape index: {}]
  %s3 = inlined_call_operand.hbm [shape: bf16[512,128], index: 3, kind: input, shape index: {}]
  %s4 = inlined_call_operand.vmem [shape: f32[1,128], index: 4, kind: input, shape index: {}]
  %s5 = inlined_call_operand.hbm [shape: f32[16,128], index: 5, kind: output, shape index: {}]
  %s6 = sld [smem:[#allocation0]]
  $region65: #{tpu_custom_call.1} parent=0
    _
  %s8 = ssub.s32 1, %s6
  %s9 = scalar_select 0, %s8, %s6
  $region1: #{tpu_custom_call.1} parent=0
    #allocation2 [shape = 'u8[8192]{0}', space=vmem, size = 0x2000, scoped, tag = 'input window, operand 0']
    #allocation3 [shape = 's32[2]{0}', space=sflag, size = 0x8, scoped, tag = 'scoped memory for tpu_custom_call.1']
    #allocation4 [shape = 's32[2]{0}', space=sflag, size = 0x8, scoped, tag = 'scoped memory for tpu_custom_call.1']
    #allocation5 [shape = 'u8[131072]{0}', space=vmem, size = 0x20000, scoped, tag = 'input window, operand 1, single buffered']
    #allocation6 [shape = 's32[1]{0}', space=sflag, size = 0x4, scoped, tag = 'scoped memory for tpu_custom_call.1']
    #allocation7 [shape = 'u8[131072]{0}', space=vmem, size = 0x20000, scoped, tag = 'input window, operand 3, single buffered']
    #allocation8 [shape = 'u8[8192]{0}', space=vmem, size = 0x2000, scoped, tag = 'output window, operand 0']
    %10 = vsyncpa [#allocation3], 0
    %s11 = scalar_lea.sflag [#allocation3], 1
    %12 = vsyncpa %s11, 0
    %13 = vsyncpa [#allocation6], 0
    %14 = vsyncpa [#allocation4], 0
    %s15 = scalar_lea.sflag [#allocation4], 1
    %16 = vsyncpa %s15, 0
    loop: start=0, step=1, limit=4
    $region2: #{tpu_custom_call.1} parent=1 // loop_pre_header
      _
    $region3: #{tpu_custom_call.1} parent=1 // loop_header
      %s18 = sphi 0, %s22
      %p19 = scmp.ge.s32.totalorder %s18, 4
      %s28 = sphi 0, %s30
      %s31 = sphi 0, %s28
      %s32 = sphi 0, %s31
      %s48 = sphi 0, %s32
      %s52 = sphi 0, %s52
      %s54 = sphi 0, %s52
      %s55 = sphi 0, %s54
      %s69 = sphi 0, %s55
      %s73 = sphi 0, %s73
      %s75 = sphi 0, %s73
      %s76 = sphi 0, %s75
      %s90 = sphi 0, %s76
      %s94 = sphi 0, %s94
      %s96 = sphi 0, %s94
      %s97 = sphi 0, %s96
      %s111 = sphi 0, %s97
      %s115 = sphi 0, %s115
      %s117 = sphi 0, %s115
      %s118 = sphi 0, %s117
      %s132 = sphi 0, %s118
      %s138 = sphi 0, %s140
      %s141 = sphi 0, %s138
      %s142 = sphi 0, %s141
      %s158 = sphi 0, %s142
    $region4: #{tpu_custom_call.1} parent=1 // loop_header_branch
      %21 = sbr.rel (%p19) target = $region8
    $region5: #{tpu_custom_call.1} parent=1 // loop_body
      %s23 = ssub.s32 %s18, 1
      %s24 = ssub.s32 %s18, 2
      %s25 = sadd.s32 %s18, 1
      %s26 = ssub.s32 %s18, %s25
      %p27 = scmp.eq.s32.totalorder %s26, 0
      %s29 = sadd.s32 %s28, 1
      %s30 = scalar_select %p27, %s28, %s29
      %p33 = pneg %p27
      %p34 = scmp.eq.s32.totalorder %s18, 1
      %p35 = por %p33, %p34
      %p36 = scmp.ne.s32.totalorder %s28, %s31
      %p37 = scmp.eq.s32.totalorder %s18, 0
      %p38 = por %p36, %p37
      %p39 = scmp.ne.s32.totalorder %s28, %s31
      %p40 = scmp.eq.s32.totalorder %s23, 1
      %p41 = por %p39, %p40
      %p42 = scmp.ne.s32.totalorder %s31, %s32
      %p43 = scmp.eq.s32.totalorder %s23, 0
      %p44 = por %p42, %p43
      %p45 = scmp.ne.s32.totalorder %s31, %s32
      %p46 = scmp.eq.s32.totalorder %s24, 1
      %p47 = por %p45, %p46
      %p49 = scmp.ne.s32.totalorder %s32, %s48
      %p50 = scmp.eq.s32.totalorder %s24, 0
      %p51 = por %p49, %p50
      %s53 = sadd.s32 %s52, 1
      %p56 = scmp.eq.s32.totalorder %s18, 1
      %p57 = scmp.ne.s32.totalorder %s52, %s54
      %p58 = scmp.eq.s32.totalorder %s18, 0
      %p59 = por %p57, %p58
      %p60 = scmp.ne.s32.totalorder %s52, %s54
      %p61 = scmp.eq.s32.totalorder %s23, 1
      %p62 = por %p60, %p61
      %p63 = scmp.ne.s32.totalorder %s54, %s55
      %p64 = scmp.eq.s32.totalorder %s23, 0
      %p65 = por %p63, %p64
      %p66 = scmp.ne.s32.totalorder %s54, %s55
      %p67 = scmp.eq.s32.totalorder %s24, 1
      %p68 = por %p66, %p67
      %p70 = scmp.ne.s32.totalorder %s55, %s69
      %p71 = scmp.eq.s32.totalorder %s24, 0
      %p72 = por %p70, %p71
      %s74 = sadd.s32 %s73, 1
      %p77 = scmp.eq.s32.totalorder %s18, 1
      %p78 = scmp.ne.s32.totalorder %s73, %s75
      %p79 = scmp.eq.s32.totalorder %s18, 0
      %p80 = por %p78, %p79
      %p81 = scmp.ne.s32.totalorder %s73, %s75
      %p82 = scmp.eq.s32.totalorder %s23, 1
      %p83 = por %p81, %p82
      %p84 = scmp.ne.s32.totalorder %s75, %s76
      %p85 = scmp.eq.s32.totalorder %s23, 0
      %p86 = por %p84, %p85
      %p87 = scmp.ne.s32.totalorder %s75, %s76
      %p88 = scmp.eq.s32.totalorder %s24, 1
      %p89 = por %p87, %p88
      %p91 = scmp.ne.s32.totalorder %s76, %s90
      %p92 = scmp.eq.s32.totalorder %s24, 0
      %p93 = por %p91, %p92
      %s95 = sadd.s32 %s94, 1
      %p98 = scmp.eq.s32.totalorder %s18, 1
      %p99 = scmp.ne.s32.totalorder %s94, %s96
      %p100 = scmp.eq.s32.totalorder %s18, 0
      %p101 = por %p99, %p100
      %p102 = scmp.ne.s32.totalorder %s94, %s96
      %p103 = scmp.eq.s32.totalorder %s23, 1
      %p104 = por %p102, %p103
      %p105 = scmp.ne.s32.totalorder %s96, %s97
      %p106 = scmp.eq.s32.totalorder %s23, 0
      %p107 = por %p105, %p106
      %p108 = scmp.ne.s32.totalorder %s96, %s97
      %p109 = scmp.eq.s32.totalorder %s24, 1
      %p110 = por %p108, %p109
      %p112 = scmp.ne.s32.totalorder %s97, %s111
      %p113 = scmp.eq.s32.totalorder %s24, 0
      %p114 = por %p112, %p113
      %s116 = sadd.s32 %s115, 1
      %p119 = scmp.eq.s32.totalorder %s18, 1
      %p120 = scmp.ne.s32.totalorder %s115, %s117
      %p121 = scmp.eq.s32.totalorder %s18, 0
      %p122 = por %p120, %p121
      %p123 = scmp.ne.s32.totalorder %s115, %s117
      %p124 = scmp.eq.s32.totalorder %s23, 1
      %p125 = por %p123, %p124
      %p126 = scmp.ne.s32.totalorder %s117, %s118
      %p127 = scmp.eq.s32.totalorder %s23, 0
      %p128 = por %p126, %p127
      %p129 = scmp.ne.s32.totalorder %s117, %s118
      %p130 = scmp.eq.s32.totalorder %s24, 1
      %p131 = por %p129, %p130
      %p133 = scmp.ne.s32.totalorder %s118, %s132
      %p134 = scmp.eq.s32.totalorder %s24, 0
      %p135 = por %p133, %p134
      %s136 = ssub.s32 %s18, %s25
      %p137 = scmp.eq.s32.totalorder %s136, 0
      %s139 = sadd.s32 %s138, 1
      %s140 = scalar_select %p137, %s138, %s139
      %p143 = pneg %p137
      %p144 = scmp.eq.s32.totalorder %s18, 1
      %p145 = por %p143, %p144
      %p146 = scmp.ne.s32.totalorder %s138, %s141
      %p147 = scmp.eq.s32.totalorder %s18, 0
      %p148 = por %p146, %p147
      %p149 = scmp.ne.s32.totalorder %s138, %s141
      %p150 = scmp.eq.s32.totalorder %s23, 1
      %p151 = por %p149, %p150
      %p152 = scmp.ne.s32.totalorder %s141, %s142
      %p153 = scmp.eq.s32.totalorder %s23, 0
      %p154 = por %p152, %p153
      %p155 = scmp.ne.s32.totalorder %s141, %s142
      %p156 = scmp.eq.s32.totalorder %s24, 1
      %p157 = por %p155, %p156
      %p159 = scmp.ne.s32.totalorder %s142, %s158
      %p160 = scmp.eq.s32.totalorder %s24, 0
      %p161 = por %p159, %p160
      %p162 = scmp.le.s32.totalorder 1, %s18
      %p163 = scmp.lt.s32.totalorder %s18, 3
      %p164 = pnand %p162, %p163
      %p165 = pneg %p164
      // Predicated region
      $region9: #{tpu_custom_call.1} parent=5 // pred_check
        _
      $region10: #{tpu_custom_call.1} parent=5 // pred_check_branch
        %167 = sbr.rel (%p164) target = $region12
      $region11: #{tpu_custom_call.1} parent=5 // pred_region
        %s168 = ssub.s32 %s18, 1
        // Predicated region
        $region13: #{tpu_custom_call.1} parent=11 // pred_check
          %p169 = pneg %p65
        $region14: #{tpu_custom_call.1} parent=11 // pred_check_branch
          %171 = sbr.rel (%p169) target = $region16
        $region15: #{tpu_custom_call.1} parent=11 // pred_region
          %s173 = ssub.s32 4096, 4096
          %174 = vsyncadd [#allocation6], %s173
          %s175 = sshll.u32 [#allocation5], 4
          %s176 = int_to_ptr.vmem [resolvable:$true] %s175
          %181 = dma.hbm_to_vmem [thread:$0]  %s1, 4096, %s176, [#allocation6], 256, 256, 16
        $region16: #{tpu_custom_call.1} parent=11 // pred_fallthru
          _
        // Predicated region
        $region17: #{tpu_custom_call.1} parent=11 // pred_check
          %p182 = pneg %p86
        $region18: #{tpu_custom_call.1} parent=11 // pred_check_branch
          %184 = sbr.rel (%p182) target = $region20
        $region19: #{tpu_custom_call.1} parent=11 // pred_region
          _
        $region20: #{tpu_custom_call.1} parent=11 // pred_fallthru
          _
        // Predicated region
        $region21: #{tpu_custom_call.1} parent=11 // pred_check
          %p185 = pneg %p107
        $region22: #{tpu_custom_call.1} parent=11 // pred_check_branch
          %187 = sbr.rel (%p185) target = $region24
        $region23: #{tpu_custom_call.1} parent=11 // pred_region
          %s189 = ssub.s32 4096, 4096
          %190 = vsyncadd [#allocation6], %s189
          %s191 = sshll.u32 [#allocation7], 4
          %s192 = int_to_ptr.vmem [resolvable:$true] %s191
          %197 = dma.hbm_to_vmem [thread:$0]  %s3, 4096, %s192, [#allocation6], 64, 64, 4
        $region24: #{tpu_custom_call.1} parent=11 // pred_fallthru
          _
        // Predicated region
        $region25: #{tpu_custom_call.1} parent=11 // pred_check
          %p198 = pneg %p128
        $region26: #{tpu_custom_call.1} parent=11 // pred_check_branch
          %200 = sbr.rel (%p198) target = $region28
        $region27: #{tpu_custom_call.1} parent=11 // pred_region
          _
        $region28: #{tpu_custom_call.1} parent=11 // pred_fallthru
          _
      $region12: #{tpu_custom_call.1} parent=5 // pred_fallthru
        _
      %p201 = scmp.lt.s32.totalorder %s18, 2
      // Predicated region
      $region29: #{tpu_custom_call.1} parent=5 // pred_check
        %p202 = pneg %p201
      $region30: #{tpu_custom_call.1} parent=5 // pred_check_branch
        %204 = sbr.rel (%p202) target = $region32
      $region31: #{tpu_custom_call.1} parent=5 // pred_region
        // Predicated region
        $region33: #{tpu_custom_call.1} parent=31 // pred_check
          %p205 = pneg %p38
        $region34: #{tpu_custom_call.1} parent=31 // pred_check_branch
          %207 = sbr.rel (%p205) target = $region36
        $region35: #{tpu_custom_call.1} parent=31 // pred_region
          %s208 = sand.u32 %s28, 1
          %s209 = scalar_lea.sflag [#allocation3], %s208
          %s210 = sand.u32 %s28, 1
          %s211 = smul.addr %s210, 8
          %s212 = scalar_lea.vmem [#allocation2], %s211
          %s214 = ssub.s32 128, 128
          %215 = vsyncadd %s209, %s214
          %s216 = smul.addr %s18, 128
          %s217 = scalar_lea.hbm %s0, %s216
          %s219 = sshll.u32 %s212, 4
          %s220 = int_to_ptr.vmem [resolvable:$true] %s219
          %222 = dma.hbm_to_vmem [thread:$0]  %s217, 128, %s220, %s209
        $region36: #{tpu_custom_call.1} parent=31 // pred_fallthru
          _
      $region32: #{tpu_custom_call.1} parent=5 // pred_fallthru
        _
      %p223 = scmp.le.s32.totalorder 1, %s18
      %p224 = scmp.lt.s32.totalorder %s18, 3
      %p225 = pnand %p223, %p224
      %p226 = pneg %p225
      // Predicated region
      $region37: #{tpu_custom_call.1} parent=5 // pred_check
        _
      $region38: #{tpu_custom_call.1} parent=5 // pred_check_branch
        %228 = sbr.rel (%p225) target = $region40
      $region39: #{tpu_custom_call.1} parent=5 // pred_region
        %s229 = ssub.s32 %s18, 1
        %s230 = sand.u32 %s31, 1
        %s231 = scalar_lea.sflag [#allocation3], %s230
        %s232 = sand.u32 %s31, 1
        %s233 = smul.addr %s232, 8
        %s234 = scalar_lea.vmem [#allocation2], %s233
        // Predicated region
        $region41: #{tpu_custom_call.1} parent=39 // pred_check
          %p235 = pneg %p44
        $region42: #{tpu_custom_call.1} parent=39 // pred_check_branch
          %237 = sbr.rel (%p235) target = $region44
        $region43: #{tpu_custom_call.1} parent=39 // pred_region
          %238 = dma.done %s231, 128
        $region44: #{tpu_custom_call.1} parent=39 // pred_fallthru
          _
        // Predicated region
        $region45: #{tpu_custom_call.1} parent=39 // pred_check
          %p239 = pneg %p65
        $region46: #{tpu_custom_call.1} parent=39 // pred_check_branch
          %241 = sbr.rel (%p239) target = $region48
        $region47: #{tpu_custom_call.1} parent=39 // pred_region
          %242 = dma.done [#allocation6], 4096
        $region48: #{tpu_custom_call.1} parent=39 // pred_fallthru
          _
        // Predicated region
        $region49: #{tpu_custom_call.1} parent=39 // pred_check
          %p243 = pneg %p107
        $region50: #{tpu_custom_call.1} parent=39 // pred_check_branch
          %245 = sbr.rel (%p243) target = $region52
        $region51: #{tpu_custom_call.1} parent=39 // pred_region
          %246 = dma.done [#allocation6], 4096
        $region52: #{tpu_custom_call.1} parent=39 // pred_fallthru
          _
        %s247 = sand.u32 %s31, 1
        %s248 = scalar_lea.sflag [#allocation3], %s247
        %s249 = sand.u32 %s31, 1
        %s250 = smul.addr %s249, 8
        %s251 = scalar_lea.vmem [#allocation2], %s250
        %p252 = pneg %p44
        %p253 = pneg %p41
        %p254 = pneg %p65
        %p255 = pneg %p62
        %p256 = pneg %p86
        %p257 = pneg %p83
        %p258 = pneg %p107
        %p259 = pneg %p104
        %p260 = pneg %p128
        %p261 = pneg %p125
        %p262 = pneg %p154
        %p263 = pneg %p151
        %s264 = sand.u32 %s141, 1
        %s265 = scalar_lea.sflag [#allocation4], %s264
        %s266 = sand.u32 %s141, 1
        %s267 = smul.addr %s266, 8
        %s268 = scalar_lea.vmem [#allocation8], %s267
        %v270 = vld [vmem:[%s234] sm:$0xff]
        %v271 = vpack.c.bf16 %v270, %v270
        %v272 = vld [vmem:[#allocation5] sm:$0xff]
        %v273 = vld [vmem:[#allocation5 + $0x8] sm:$0xff]
        %v274 = vld [vmem:[#allocation5 + $0x10] sm:$0xff]
        %v275 = vld [vmem:[#allocation5 + $0x18] sm:$0xff]
        %v276 = vld [vmem:[#allocation5 + $0x20] sm:$0xff]
        %v277 = vld [vmem:[#allocation5 + $0x28] sm:$0xff]
        %v278 = vld [vmem:[#allocation5 + $0x30] sm:$0xff]
        %v279 = vld [vmem:[#allocation5 + $0x38] sm:$0xff]
        %v280 = vld [vmem:[#allocation5 + $0x40] sm:$0xff]
        %v281 = vld [vmem:[#allocation5 + $0x48] sm:$0xff]
        %v282 = vld [vmem:[#allocation5 + $0x50] sm:$0xff]
        %v283 = vld [vmem:[#allocation5 + $0x58] sm:$0xff]
        %v284 = vld [vmem:[#allocation5 + $0x60] sm:$0xff]
        %v285 = vld [vmem:[#allocation5 + $0x68] sm:$0xff]
        %v286 = vld [vmem:[#allocation5 + $0x70] sm:$0xff]
        %v287 = vld [vmem:[#allocation5 + $0x78] sm:$0xff]
        %v288 = vld [vmem:[#allocation5 + $0x80] sm:$0xff]
        %v289 = vld [vmem:[#allocation5 + $0x88] sm:$0xff]
        %v290 = vld [vmem:[#allocation5 + $0x90] sm:$0xff]
        %v291 = vld [vmem:[#allocation5 + $0x98] sm:$0xff]
        %v292 = vld [vmem:[#allocation5 + $0xa0] sm:$0xff]
        %v293 = vld [vmem:[#allocation5 + $0xa8] sm:$0xff]
        %v294 = vld [vmem:[#allocation5 + $0xb0] sm:$0xff]
        %v295 = vld [vmem:[#allocation5 + $0xb8] sm:$0xff]
        %v296 = vld [vmem:[#allocation5 + $0xc0] sm:$0xff]
        %v297 = vld [vmem:[#allocation5 + $0xc8] sm:$0xff]
        %v298 = vld [vmem:[#allocation5 + $0xd0] sm:$0xff]
        %v299 = vld [vmem:[#allocation5 + $0xd8] sm:$0xff]
        %v300 = vld [vmem:[#allocation5 + $0xe0] sm:$0xff]
        %v301 = vld [vmem:[#allocation5 + $0xe8] sm:$0xff]
        %v302 = vld [vmem:[#allocation5 + $0xf0] sm:$0xff]
        %v303 = vld [vmem:[#allocation5 + $0xf8] sm:$0xff]
        %v304 = vld [vmem:[%s2] sm:$0xf]
        %v306 = vlaneseq
        %v307 = vshrl.u32 %v306, 7
        %v308 = vsub.s32 0, %v307
        %v309 = vrot.slane %v304, %v308
        %v310 = vlaneseq
        %v311 = vshrl.u32 %v310, 7
        %v312 = vsub.s32 1, %v311
        %v313 = vrot.slane %v304, %v312
        %v314 = vlaneseq
        %v315 = vshrl.u32 %v314, 7
        %v316 = vsub.s32 2, %v315
        %v317 = vrot.slane %v304, %v316
        %v318 = vlaneseq
        %v319 = vshrl.u32 %v318, 7
        %v320 = vsub.s32 3, %v319
        %v321 = vrot.slane %v304, %v320
        %v358 = vunpack.c.l.b16 %v272
        %v359 = vunpack.c.h.b16 %v272
        %v360 = vunpack.c.l.b16 %v273
        %v361 = vunpack.c.h.b16 %v273
        %v362 = vunpack.c.l.b16 %v274
        %v363 = vunpack.c.h.b16 %v274
        %v364 = vunpack.c.l.b16 %v275
        %v365 = vunpack.c.h.b16 %v275
        %v366 = vunpack.c.l.b16 %v276
        %v367 = vunpack.c.h.b16 %v276
        %v368 = vunpack.c.l.b16 %v277
        %v369 = vunpack.c.h.b16 %v277
        %v370 = vunpack.c.l.b16 %v278
        %v371 = vunpack.c.h.b16 %v278
        %v372 = vunpack.c.l.b16 %v279
        %v373 = vunpack.c.h.b16 %v279
        %v374 = vunpack.c.l.b16 %v280
        %v375 = vunpack.c.h.b16 %v280
        %v376 = vunpack.c.l.b16 %v281
        %v377 = vunpack.c.h.b16 %v281
        %v378 = vunpack.c.l.b16 %v282
        %v379 = vunpack.c.h.b16 %v282
        %v380 = vunpack.c.l.b16 %v283
        %v381 = vunpack.c.h.b16 %v283
        %v382 = vunpack.c.l.b16 %v284
        %v383 = vunpack.c.h.b16 %v284
        %v384 = vunpack.c.l.b16 %v285
        %v385 = vunpack.c.h.b16 %v285
        %v386 = vunpack.c.l.b16 %v286
        %v387 = vunpack.c.h.b16 %v286
        %v388 = vunpack.c.l.b16 %v287
        %v389 = vunpack.c.h.b16 %v287
        %v390 = vunpack.c.l.b16 %v288
        %v391 = vunpack.c.h.b16 %v288
        %v392 = vunpack.c.l.b16 %v289
        %v393 = vunpack.c.h.b16 %v289
        %v394 = vunpack.c.l.b16 %v290
        %v395 = vunpack.c.h.b16 %v290
        %v396 = vunpack.c.l.b16 %v291
        %v397 = vunpack.c.h.b16 %v291
        %v398 = vunpack.c.l.b16 %v292
        %v399 = vunpack.c.h.b16 %v292
        %v400 = vunpack.c.l.b16 %v293
        %v401 = vunpack.c.h.b16 %v293
        %v402 = vunpack.c.l.b16 %v294
        %v403 = vunpack.c.h.b16 %v294
        %v404 = vunpack.c.l.b16 %v295
        %v405 = vunpack.c.h.b16 %v295
        %v406 = vunpack.c.l.b16 %v296
        %v407 = vunpack.c.h.b16 %v296
        %v408 = vunpack.c.l.b16 %v297
        %v409 = vunpack.c.h.b16 %v297
        %v410 = vunpack.c.l.b16 %v298
        %v411 = vunpack.c.h.b16 %v298
        %v412 = vunpack.c.l.b16 %v299
        %v413 = vunpack.c.h.b16 %v299
        %v414 = vunpack.c.l.b16 %v300
        %v415 = vunpack.c.h.b16 %v300
        %v416 = vunpack.c.l.b16 %v301
        %v417 = vunpack.c.h.b16 %v301
        %v418 = vunpack.c.l.b16 %v302
        %v419 = vunpack.c.h.b16 %v302
        %v420 = vunpack.c.l.b16 %v303
        %v421 = vunpack.c.h.b16 %v303
        %v422 = vpack.c.b16 %v362, %v358
        %v423 = vpack.c.b16 %v363, %v359
        %v424 = vpack.c.b16 %v364, %v360
        %v425 = vpack.c.b16 %v365, %v361
        %v426 = vpack.c.b16 %v370, %v366
        %v427 = vpack.c.b16 %v371, %v367
        %v428 = vpack.c.b16 %v372, %v368
        %v429 = vpack.c.b16 %v373, %v369
        %v430 = vpack.c.b16 %v378, %v374
        %v431 = vpack.c.b16 %v379, %v375
        %v432 = vpack.c.b16 %v380, %v376
        %v433 = vpack.c.b16 %v381, %v377
        %v434 = vpack.c.b16 %v386, %v382
        %v435 = vpack.c.b16 %v387, %v383
        %v436 = vpack.c.b16 %v388, %v384
        %v437 = vpack.c.b16 %v389, %v385
        %v438 = vpack.c.b16 %v394, %v390
        %v439 = vpack.c.b16 %v395, %v391
        %v440 = vpack.c.b16 %v396, %v392
        %v441 = vpack.c.b16 %v397, %v393
        %v442 = vpack.c.b16 %v402, %v398
        %v443 = vpack.c.b16 %v403, %v399
        %v444 = vpack.c.b16 %v404, %v400
        %v445 = vpack.c.b16 %v405, %v401
        %v446 = vpack.c.b16 %v410, %v406
        %v447 = vpack.c.b16 %v411, %v407
        %v448 = vpack.c.b16 %v412, %v408
        %v449 = vpack.c.b16 %v413, %v409
        %v450 = vpack.c.b16 %v418, %v414
        %v451 = vpack.c.b16 %v419, %v415
        %v452 = vpack.c.b16 %v420, %v416
        %v453 = vpack.c.b16 %v421, %v417
        %486 = vmatprep.subr.bf16.mxu0 %v423
        %487 = vmatpush1.bf16.msra.mxu0 %v422
        %488 = vmatprep.subr.bf16.mxu0 %v427
        %489 = vmatpush1.bf16.msra.mxu0 %v426
        %490 = vmatprep.subr.bf16.mxu0 %v431
        %491 = vmatpush1.bf16.msra.mxu0 %v430
        %492 = vmatprep.subr.bf16.mxu0 %v435
        %493 = vmatpush1.bf16.msra.mxu0 %v434
        %494 = vmatprep.subr.bf16.mxu0 %v439
        %495 = vmatpush1.bf16.msra.mxu0 %v438
        %496 = vmatprep.subr.bf16.mxu0 %v443
        %497 = vmatpush1.bf16.msra.mxu0 %v442
        %498 = vmatprep.subr.bf16.mxu0 %v447
        %499 = vmatpush1.bf16.msra.mxu0 %v446
        %500 = vmatprep.subr.bf16.mxu0 %v451
        %501 = vmatpush1.bf16.msra.mxu0 %v450
        %502 = vmatprep.subr.bf16.mxu0 0
        %503 = vmatpush1.bf16.msra.mxu0 0
        %504 = vmatprep.subr.bf16.mxu0 0
        %505 = vmatpush1.bf16.msra.mxu0 0
        %506 = vmatprep.subr.bf16.mxu0 0
        %507 = vmatpush1.bf16.msra.mxu0 0
        %508 = vmatprep.subr.bf16.mxu0 0
        %509 = vmatpush1.bf16.msra.mxu0 0
        %510 = vmatprep.subr.bf16.mxu0 0
        %511 = vmatpush1.bf16.msra.mxu0 0
        %512 = vmatprep.subr.bf16.mxu0 0
        %513 = vmatpush1.bf16.msra.mxu0 0
        %514 = vmatprep.subr.bf16.mxu0 0
        %515 = vmatpush1.bf16.msra.mxu0 0
        %516 = vmatprep.subr.bf16.mxu0 0
        %517 = vmatpush1.bf16.msra.mxu0 0
        %518 = vmatprep.mubr.bf16.mxu0 0
        %519 = vmatmul.mubr.bf16.gmra.mrb[0].mxu0 %v271
        %v520 = vpop.f32.mrb[0].mxu0
        %v521 = vadd.f32 %v309, %v520
        %v522 = vpop.f32.mrb[0].mxu0
        %v523 = vadd.f32 %v313, %v522
        %v524 = vpop.f32.mrb[0].mxu0
        %v525 = vpop.f32.mrb[0].mxu0
        %526 = vdwg.mxu0
        %527 = vmatprep.subr.bf16.mxu0 %v425
        %528 = vmatpush1.bf16.msra.mxu0 %v424
        %529 = vmatprep.subr.bf16.mxu0 %v429
        %530 = vmatpush1.bf16.msra.mxu0 %v428
        %531 = vmatprep.subr.bf16.mxu0 %v433
        %532 = vmatpush1.bf16.msra.mxu0 %v432
        %533 = vmatprep.subr.bf16.mxu0 %v437
        %534 = vmatpush1.bf16.msra.mxu0 %v436
        %535 = vmatprep.subr.bf16.mxu0 %v441
        %536 = vmatpush1.bf16.msra.mxu0 %v440
        %537 = vmatprep.subr.bf16.mxu0 %v445
        %538 = vmatpush1.bf16.msra.mxu0 %v444
        %539 = vmatprep.subr.bf16.mxu0 %v449
        %540 = vmatpush1.bf16.msra.mxu0 %v448
        %541 = vmatprep.subr.bf16.mxu0 %v453
        %542 = vmatpush1.bf16.msra.mxu0 %v452
        %543 = vmatprep.subr.bf16.mxu0 0
        %544 = vmatpush1.bf16.msra.mxu0 0
        %545 = vmatprep.subr.bf16.mxu0 0
        %546 = vmatpush1.bf16.msra.mxu0 0
        %547 = vmatprep.subr.bf16.mxu0 0
        %548 = vmatpush1.bf16.msra.mxu0 0
        %549 = vmatprep.subr.bf16.mxu0 0
        %550 = vmatpush1.bf16.msra.mxu0 0
        %551 = vmatprep.subr.bf16.mxu0 0
        %552 = vmatpush1.bf16.msra.mxu0 0
        %553 = vmatprep.subr.bf16.mxu0 0
        %554 = vmatpush1.bf16.msra.mxu0 0
        %555 = vmatprep.subr.bf16.mxu0 0
        %556 = vmatpush1.bf16.msra.mxu0 0
        %557 = vmatprep.subr.bf16.mxu0 0
        %558 = vmatpush1.bf16.msra.mxu0 0
        %559 = vmatprep.mubr.bf16.mxu0 0
        %560 = vmatmul.mubr.bf16.gmra.mrb[0].mxu0 %v271
        %v561 = vpop.f32.mrb[0].mxu0
        %v562 = vadd.f32 %v317, %v561
        %v563 = vpop.f32.mrb[0].mxu0
        %v564 = vadd.f32 %v321, %v563
        %v565 = vpop.f32.mrb[0].mxu0
        %v566 = vpop.f32.mrb[0].mxu0
        %567 = vdwg.mxu0
        %v568 = vmul.f32 %v521, 0.5
        %v569 = vmul.f32 %v523, 0.5
        %v570 = vmul.f32 %v562, 0.5
        %v571 = vmul.f32 %v564, 0.5
        %v572 = vmul.f32 %v521, 0.044715
        %v573 = vmul.f32 %v523, 0.044715
        %v574 = vmul.f32 %v562, 0.044715
        %v575 = vmul.f32 %v564, 0.044715
        %v576 = vmul.f32 %v572, %v521
        %v577 = vmul.f32 %v573, %v523
        %v578 = vmul.f32 %v574, %v562
        %v579 = vmul.f32 %v575, %v564
        %v580 = vmul.f32 %v576, %v521
        %v581 = vmul.f32 %v577, %v523
        %v582 = vmul.f32 %v578, %v562
        %v583 = vmul.f32 %v579, %v564
        %v584 = vadd.f32 %v521, %v580
        %v585 = vadd.f32 %v523, %v581
        %v586 = vadd.f32 %v562, %v582
        %v587 = vadd.f32 %v564, %v583
        %v588 = vmul.f32 %v584, 0.7978846
        %v589 = vmul.f32 %v585, 0.7978846
        %v590 = vmul.f32 %v586, 0.7978846
        %v591 = vmul.f32 %v587, 0.7978846
        %v592 = vtanh.pop %v588
        %v593 = vtanh.pop %v589
        %v594 = vtanh.pop %v590
        %v595 = vtanh.pop %v591
        %v596 = vadd.f32 %v592, 1.0
        %v597 = vadd.f32 %v593, 1.0
        %v598 = vadd.f32 %v594, 1.0
        %v599 = vadd.f32 %v595, 1.0
        %v600 = vmul.f32 %v568, %v596
        %v601 = vmul.f32 %v569, %v597
        %v602 = vmul.f32 %v570, %v598
        %v603 = vmul.f32 %v571, %v599
        %v604 = vpack.c.bf16 %v600, %v600
        %v605 = vpack.c.bf16 %v601, %v601
        %v606 = vpack.c.bf16 %v602, %v602
        %v607 = vpack.c.bf16 %v603, %v603
        %v608 = vld [vmem:[#allocation7] sm:$0xf]
        %v609 = vld [vmem:[#allocation7 + $0x4] sm:$0xf]
        %v610 = vld [vmem:[#allocation7 + $0x8] sm:$0xf]
        %v611 = vld [vmem:[#allocation7 + $0xc] sm:$0xf]
        %v612 = vld [vmem:[#allocation7 + $0x10] sm:$0xf]
        %v613 = vld [vmem:[#allocation7 + $0x14] sm:$0xf]
        %v614 = vld [vmem:[#allocation7 + $0x18] sm:$0xf]
        %v615 = vld [vmem:[#allocation7 + $0x1c] sm:$0xf]
        %v616 = vld [vmem:[#allocation7 + $0x20] sm:$0xf]
        %v617 = vld [vmem:[#allocation7 + $0x24] sm:$0xf]
        %v618 = vld [vmem:[#allocation7 + $0x28] sm:$0xf]
        %v619 = vld [vmem:[#allocation7 + $0x2c] sm:$0xf]
        %v620 = vld [vmem:[#allocation7 + $0x30] sm:$0xf]
        %v621 = vld [vmem:[#allocation7 + $0x34] sm:$0xf]
        %v622 = vld [vmem:[#allocation7 + $0x38] sm:$0xf]
        %v623 = vld [vmem:[#allocation7 + $0x3c] sm:$0xf]
        %v624 = vld [vmem:[#allocation7 + $0x40] sm:$0xf]
        %v625 = vld [vmem:[#allocation7 + $0x44] sm:$0xf]
        %v626 = vld [vmem:[#allocation7 + $0x48] sm:$0xf]
        %v627 = vld [vmem:[#allocation7 + $0x4c] sm:$0xf]
        %v628 = vld [vmem:[#allocation7 + $0x50] sm:$0xf]
        %v629 = vld [vmem:[#allocation7 + $0x54] sm:$0xf]
        %v630 = vld [vmem:[#allocation7 + $0x58] sm:$0xf]
        %v631 = vld [vmem:[#allocation7 + $0x5c] sm:$0xf]
        %v632 = vld [vmem:[#allocation7 + $0x60] sm:$0xf]
        %v633 = vld [vmem:[#allocation7 + $0x64] sm:$0xf]
        %v634 = vld [vmem:[#allocation7 + $0x68] sm:$0xf]
        %v635 = vld [vmem:[#allocation7 + $0x6c] sm:$0xf]
        %v636 = vld [vmem:[#allocation7 + $0x70] sm:$0xf]
        %v637 = vld [vmem:[#allocation7 + $0x74] sm:$0xf]
        %v638 = vld [vmem:[#allocation7 + $0x78] sm:$0xf]
        %v639 = vld [vmem:[#allocation7 + $0x7c] sm:$0xf]
        %v640 = vld [vmem:[#allocation7 + $0x80] sm:$0xf]
        %v641 = vld [vmem:[#allocation7 + $0x84] sm:$0xf]
        %v642 = vld [vmem:[#allocation7 + $0x88] sm:$0xf]
        %v643 = vld [vmem:[#allocation7 + $0x8c] sm:$0xf]
        %v644 = vld [vmem:[#allocation7 + $0x90] sm:$0xf]
        %v645 = vld [vmem:[#allocation7 + $0x94] sm:$0xf]
        %v646 = vld [vmem:[#allocation7 + $0x98] sm:$0xf]
        %v647 = vld [vmem:[#allocation7 + $0x9c] sm:$0xf]
        %v648 = vld [vmem:[#allocation7 + $0xa0] sm:$0xf]
        %v649 = vld [vmem:[#allocation7 + $0xa4] sm:$0xf]
        %v650 = vld [vmem:[#allocation7 + $0xa8] sm:$0xf]
        %v651 = vld [vmem:[#allocation7 + $0xac] sm:$0xf]
        %v652 = vld [vmem:[#allocation7 + $0xb0] sm:$0xf]
        %v653 = vld [vmem:[#allocation7 + $0xb4] sm:$0xf]
        %v654 = vld [vmem:[#allocation7 + $0xb8] sm:$0xf]
        %v655 = vld [vmem:[#allocation7 + $0xbc] sm:$0xf]
        %v656 = vld [vmem:[#allocation7 + $0xc0] sm:$0xf]
        %v657 = vld [vmem:[#allocation7 + $0xc4] sm:$0xf]
        %v658 = vld [vmem:[#allocation7 + $0xc8] sm:$0xf]
        %v659 = vld [vmem:[#allocation7 + $0xcc] sm:$0xf]
        %v660 = vld [vmem:[#allocation7 + $0xd0] sm:$0xf]
        %v661 = vld [vmem:[#allocation7 + $0xd4] sm:$0xf]
        %v662 = vld [vmem:[#allocation7 + $0xd8] sm:$0xf]
        %v663 = vld [vmem:[#allocation7 + $0xdc] sm:$0xf]
        %v664 = vld [vmem:[#allocation7 + $0xe0] sm:$0xf]
        %v665 = vld [vmem:[#allocation7 + $0xe4] sm:$0xf]
        %v666 = vld [vmem:[#allocation7 + $0xe8] sm:$0xf]
        %v667 = vld [vmem:[#allocation7 + $0xec] sm:$0xf]
        %v668 = vld [vmem:[#allocation7 + $0xf0] sm:$0xf]
        %v669 = vld [vmem:[#allocation7 + $0xf4] sm:$0xf]
        %v670 = vld [vmem:[#allocation7 + $0xf8] sm:$0xf]
        %v671 = vld [vmem:[#allocation7 + $0xfc] sm:$0xf]
        %v672 = vld [vmem:[%s4] sm:$0x1]
        %v674 = vlaneseq
        %v675 = vshrl.u32 %v674, 7
        %v676 = vsub.s32 0, %v675
        %v677 = vrot.slane %v672, %v676
        %v743 = vunpack.c.l.b16 %v608
        %v744 = vunpack.c.l.b16 %v609
        %v745 = vunpack.c.l.b16 %v610
        %v746 = vunpack.c.l.b16 %v611
        %v747 = vunpack.c.l.b16 %v612
        %v748 = vunpack.c.l.b16 %v613
        %v749 = vunpack.c.l.b16 %v614
        %v750 = vunpack.c.l.b16 %v615
        %v751 = vunpack.c.l.b16 %v616
        %v752 = vunpack.c.l.b16 %v617
        %v753 = vunpack.c.l.b16 %v618
        %v754 = vunpack.c.l.b16 %v619
        %v755 = vunpack.c.l.b16 %v620
        %v756 = vunpack.c.l.b16 %v621
        %v757 = vunpack.c.l.b16 %v622
        %v758 = vunpack.c.l.b16 %v623
        %v759 = vunpack.c.l.b16 %v624
        %v760 = vunpack.c.l.b16 %v625
        %v761 = vunpack.c.l.b16 %v626
        %v762 = vunpack.c.l.b16 %v627
        %v763 = vunpack.c.l.b16 %v628
        %v764 = vunpack.c.l.b16 %v629
        %v765 = vunpack.c.l.b16 %v630
        %v766 = vunpack.c.l.b16 %v631
        %v767 = vunpack.c.l.b16 %v632
        %v768 = vunpack.c.l.b16 %v633
        %v769 = vunpack.c.l.b16 %v634
        %v770 = vunpack.c.l.b16 %v635
        %v771 = vunpack.c.l.b16 %v636
        %v772 = vunpack.c.l.b16 %v637
        %v773 = vunpack.c.l.b16 %v638
        %v774 = vunpack.c.l.b16 %v639
        %v775 = vunpack.c.l.b16 %v640
        %v776 = vunpack.c.l.b16 %v641
        %v777 = vunpack.c.l.b16 %v642
        %v778 = vunpack.c.l.b16 %v643
        %v779 = vunpack.c.l.b16 %v644
        %v780 = vunpack.c.l.b16 %v645
        %v781 = vunpack.c.l.b16 %v646
        %v782 = vunpack.c.l.b16 %v647
        %v783 = vunpack.c.l.b16 %v648
        %v784 = vunpack.c.l.b16 %v649
        %v785 = vunpack.c.l.b16 %v650
        %v786 = vunpack.c.l.b16 %v651
        %v787 = vunpack.c.l.b16 %v652
        %v788 = vunpack.c.l.b16 %v653
        %v789 = vunpack.c.l.b16 %v654
        %v790 = vunpack.c.l.b16 %v655
        %v791 = vunpack.c.l.b16 %v656
        %v792 = vunpack.c.l.b16 %v657
        %v793 = vunpack.c.l.b16 %v658
        %v794 = vunpack.c.l.b16 %v659
        %v795 = vunpack.c.l.b16 %v660
        %v796 = vunpack.c.l.b16 %v661
        %v797 = vunpack.c.l.b16 %v662
        %v798 = vunpack.c.l.b16 %v663
        %v799 = vunpack.c.l.b16 %v664
        %v800 = vunpack.c.l.b16 %v665
        %v801 = vunpack.c.l.b16 %v666
        %v802 = vunpack.c.l.b16 %v667
        %v803 = vunpack.c.l.b16 %v668
        %v804 = vunpack.c.l.b16 %v669
        %v805 = vunpack.c.l.b16 %v670
        %v806 = vunpack.c.l.b16 %v671
        %v807 = vpack.c.b16 %v744, %v743
        %v808 = vpack.c.b16 %v746, %v745
        %v809 = vpack.c.b16 %v748, %v747
        %v810 = vpack.c.b16 %v750, %v749
        %v811 = vpack.c.b16 %v752, %v751
        %v812 = vpack.c.b16 %v754, %v753
        %v813 = vpack.c.b16 %v756, %v755
        %v814 = vpack.c.b16 %v758, %v757
        %v815 = vpack.c.b16 %v760, %v759
        %v816 = vpack.c.b16 %v762, %v761
        %v817 = vpack.c.b16 %v764, %v763
        %v818 = vpack.c.b16 %v766, %v765
        %v819 = vpack.c.b16 %v768, %v767
        %v820 = vpack.c.b16 %v770, %v769
        %v821 = vpack.c.b16 %v772, %v771
        %v822 = vpack.c.b16 %v774, %v773
        %v823 = vpack.c.b16 %v776, %v775
        %v824 = vpack.c.b16 %v778, %v777
        %v825 = vpack.c.b16 %v780, %v779
        %v826 = vpack.c.b16 %v782, %v781
        %v827 = vpack.c.b16 %v784, %v783
        %v828 = vpack.c.b16 %v786, %v785
        %v829 = vpack.c.b16 %v788, %v787
        %v830 = vpack.c.b16 %v790, %v789
        %v831 = vpack.c.b16 %v792, %v791
        %v832 = vpack.c.b16 %v794, %v793
        %v833 = vpack.c.b16 %v796, %v795
        %v834 = vpack.c.b16 %v798, %v797
        %v835 = vpack.c.b16 %v800, %v799
        %v836 = vpack.c.b16 %v802, %v801
        %v837 = vpack.c.b16 %v804, %v803
        %v838 = vpack.c.b16 %v806, %v805
        %871 = vmatprep.subr.bf16.mxu0 0
        %872 = vmatpush1.bf16.msra.mxu0 %v807
        %873 = vmatprep.subr.bf16.mxu0 0
        %874 = vmatpush1.bf16.msra.mxu0 %v808
        %875 = vmatprep.subr.bf16.mxu0 0
        %876 = vmatpush1.bf16.msra.mxu0 %v809
        %877 = vmatprep.subr.bf16.mxu0 0
        %878 = vmatpush1.bf16.msra.mxu0 %v810
        %879 = vmatprep.subr.bf16.mxu0 0
        %880 = vmatpush1.bf16.msra.mxu0 %v811
        %881 = vmatprep.subr.bf16.mxu0 0
        %882 = vmatpush1.bf16.msra.mxu0 %v812
        %883 = vmatprep.subr.bf16.mxu0 0
        %884 = vmatpush1.bf16.msra.mxu0 %v813
        %885 = vmatprep.subr.bf16.mxu0 0
        %886 = vmatpush1.bf16.msra.mxu0 %v814
        %887 = vmatprep.subr.bf16.mxu0 0
        %888 = vmatpush1.bf16.msra.mxu0 %v815
        %889 = vmatprep.subr.bf16.mxu0 0
        %890 = vmatpush1.bf16.msra.mxu0 %v816
        %891 = vmatprep.subr.bf16.mxu0 0
        %892 = vmatpush1.bf16.msra.mxu0 %v817
        %893 = vmatprep.subr.bf16.mxu0 0
        %894 = vmatpush1.bf16.msra.mxu0 %v818
        %895 = vmatprep.subr.bf16.mxu0 0
        %896 = vmatpush1.bf16.msra.mxu0 %v819
        %897 = vmatprep.subr.bf16.mxu0 0
        %898 = vmatpush1.bf16.msra.mxu0 %v820
        %899 = vmatprep.subr.bf16.mxu0 0
        %900 = vmatpush1.bf16.msra.mxu0 %v821
        %901 = vmatprep.subr.bf16.mxu0 0
        %902 = vmatpush1.bf16.msra.mxu0 %v822
        %903 = vmatprep.mubr.bf16.mxu0 %v605
        %904 = vmatmul.mubr.bf16.gmra.mrb[0].mxu0 %v604
        %v905 = vpop.f32.mrb[0].mxu0
        %v906 = vadd.f32 %v677, %v905
        %v907 = vpop.f32.mrb[0].mxu0
        %v908 = vpop.f32.mrb[0].mxu0
        %v909 = vpop.f32.mrb[0].mxu0
        %910 = vdwg.mxu0
        %911 = vmatprep.subr.bf16.mxu0 0
        %912 = vmatpush1.bf16.msra.mxu0 %v823
        %913 = vmatprep.subr.bf16.mxu0 0
        %914 = vmatpush1.bf16.msra.mxu0 %v824
        %915 = vmatprep.subr.bf16.mxu0 0
        %916 = vmatpush1.bf16.msra.mxu0 %v825
        %917 = vmatprep.subr.bf16.mxu0 0
        %918 = vmatpush1.bf16.msra.mxu0 %v826
        %919 = vmatprep.subr.bf16.mxu0 0
        %920 = vmatpush1.bf16.msra.mxu0 %v827
        %921 = vmatprep.subr.bf16.mxu0 0
        %922 = vmatpush1.bf16.msra.mxu0 %v828
        %923 = vmatprep.subr.bf16.mxu0 0
        %924 = vmatpush1.bf16.msra.mxu0 %v829
        %925 = vmatprep.subr.bf16.mxu0 0
        %926 = vmatpush1.bf16.msra.mxu0 %v830
        %927 = vmatprep.subr.bf16.mxu0 0
        %928 = vmatpush1.bf16.msra.mxu0 %v831
        %929 = vmatprep.subr.bf16.mxu0 0
        %930 = vmatpush1.bf16.msra.mxu0 %v832
        %931 = vmatprep.subr.bf16.mxu0 0
        %932 = vmatpush1.bf16.msra.mxu0 %v833
        %933 = vmatprep.subr.bf16.mxu0 0
        %934 = vmatpush1.bf16.msra.mxu0 %v834
        %935 = vmatprep.subr.bf16.mxu0 0
        %936 = vmatpush1.bf16.msra.mxu0 %v835
        %937 = vmatprep.subr.bf16.mxu0 0
        %938 = vmatpush1.bf16.msra.mxu0 %v836
        %939 = vmatprep.subr.bf16.mxu0 0
        %940 = vmatpush1.bf16.msra.mxu0 %v837
        %941 = vmatprep.subr.bf16.mxu0 0
        %942 = vmatpush1.bf16.msra.mxu0 %v838
        %943 = vmatprep.mubr.bf16.mxu0 %v607
        %944 = vmatmul.mubr.bf16.gmra.mrb[0].mxu0 %v606
        %v945 = vpop.f32.mrb[0].mxu0
        %v946 = vadd.f32 %v906, %v945
        %v947 = vpop.f32.mrb[0].mxu0
        %v948 = vpop.f32.mrb[0].mxu0
        %v949 = vpop.f32.mrb[0].mxu0
        %950 = vdwg.mxu0
        %951 = vst [vmem:[%s268] sm:$0xff] %v946
        %s952 = sand.u32 %s141, 1
        %s953 = scalar_lea.sflag [#allocation4], %s952
        %s954 = sand.u32 %s141, 1
        %s955 = smul.addr %s954, 8
        %s956 = scalar_lea.vmem [#allocation8], %s955
        // Predicated region
        $region53: #{tpu_custom_call.1} parent=39 // pred_check
          %p957 = pneg %p151
        $region54: #{tpu_custom_call.1} parent=39 // pred_check_branch
          %959 = sbr.rel (%p957) target = $region56
        $region55: #{tpu_custom_call.1} parent=39 // pred_region
          %s961 = ssub.s32 128, 128
          %962 = vsyncadd %s953, %s961
          %s963 = smul.addr %s23, 128
          %s964 = scalar_lea.hbm %s5, %s963
          %s966 = sshll.u32 %s956, 4
          %s967 = int_to_ptr.vmem [resolvable:$true] %s966
          %969 = dma.vmem_to_hbm [thread:$0]  %s967, 128, %s964, %s953
        $region56: #{tpu_custom_call.1} parent=39 // pred_fallthru
          _
      $region40: #{tpu_custom_call.1} parent=5 // pred_fallthru
        _
      %p970 = scmp.le.s32.totalorder 2, %s18
      // Predicated region
      $region57: #{tpu_custom_call.1} parent=5 // pred_check
        %p971 = pneg %p970
      $region58: #{tpu_custom_call.1} parent=5 // pred_check_branch
        %973 = sbr.rel (%p971) target = $region60
      $region59: #{tpu_custom_call.1} parent=5 // pred_region
        %s974 = ssub.s32 %s18, 2
        // Predicated region
        $region61: #{tpu_custom_call.1} parent=59 // pred_check
          %p975 = pneg %p157
        $region62: #{tpu_custom_call.1} parent=59 // pred_check_branch
          %977 = sbr.rel (%p975) target = $region64
        $region63: #{tpu_custom_call.1} parent=59 // pred_region
          %s978 = sand.u32 %s142, 1
          %s979 = scalar_lea.sflag [#allocation4], %s978
          %s980 = sand.u32 %s142, 1
          %s981 = smul.addr %s980, 8
          %s982 = scalar_lea.vmem [#allocation8], %s981
          %983 = dma.done %s979, 128
        $region64: #{tpu_custom_call.1} parent=59 // pred_fallthru
          _
      $region60: #{tpu_custom_call.1} parent=5 // pred_fallthru
        _
    $region6: #{tpu_custom_call.1} parent=1 // loop_footer
      %s22 = sadd.s32 1, %s18
    $region7: #{tpu_custom_call.1} parent=1 // loop_footer_branch
      %17 = sbr.rel target = $region3
    $region8: #{tpu_custom_call.1} parent=1 // loop_exit
      _
    %984 = vsyncpa [#allocation3], 1
    %s985 = scalar_lea.sflag [#allocation3], 1
    %986 = vsyncpa %s985, 1
    %987 = vsyncpa [#allocation6], 1
    %988 = vsyncpa [#allocation4], 1
    %s989 = scalar_lea.sflag [#allocation4], 1
    %990 = vsyncpa %s989, 1

</llo_original>
